<compile_context>
chip_gen: v7x
topology: tpu7x:2x2x1
jax: 0.10.0
libtpu: 0.0.40
codegen_flags: <defaults>
</compile_context>

<pallas_src>
from functools import partial

import jax
import jax.numpy as jnp
from jax.experimental import pallas as pl
from jax.experimental.pallas import tpu as pltpu

STATE_DIM = 64
HIDDEN_DIMS = [64, 64]
SIGMOID_HEAD = 1 + 1          # first two scalar outputs -> sigmoid
SOFTMAX_GROUPS = 6            # six categorical heads ...
SOFTMAX_WIDTH = 5             # ... with 5 classes each -> per-group softmax
SIGMOID_TAIL = 3              # last three outputs -> sigmoid
PO_DIM = SIGMOID_HEAD + SOFTMAX_GROUPS * SOFTMAX_WIDTH + SIGMOID_TAIL  # 35
OUT_PAD = 128                 # lane-dense padded output width
SOFT_START = SIGMOID_HEAD                                   # 2
SOFT_END = SOFT_START + SOFTMAX_GROUPS * SOFTMAX_WIDTH      # 32
MAX_TILE = 4096               # max rows per grid step (fits scoped VMEM everywhere)


def decoder_kernel(x_ref, w1_ref, b1_ref, w2_ref, b2_ref, wo_ref, bo_ref,
                   g_ref, o_ref):
    x = x_ref[...]                                            # (TB, 64)

    # hidden layer 1: Linear + ReLU (Dropout(p=0.05) is identity at inference)
    h = jnp.dot(x, w1_ref[...], preferred_element_type=jnp.float32) + b1_ref[...]
    h = jnp.maximum(h, 0.0)

    # hidden layer 2: Linear + ReLU (+ identity dropout)
    h = jnp.dot(h, w2_ref[...], preferred_element_type=jnp.float32) + b2_ref[...]
    h = jnp.maximum(h, 0.0)

    # output projection to the lane-padded logit slab (TB, 128); lanes >= 35
    # carry zero weight/bias and are sliced off (or ignored) by the wrapper.
    y = jnp.dot(h, wo_ref[...], preferred_element_type=jnp.float32) + bo_ref[...]

    # separate_softmax_sigmoid semantics (from po_dim = 1 + 1 + 6*5 + 3):
    # sigmoid on features [0:2] and [32:35], independent softmax over each
    # contiguous 5-wide block in [2:32].
    lane = jax.lax.broadcasted_iota(jnp.int32, (1, OUT_PAD), 1)
    soft_mask = jnp.logical_and(lane >= SOFT_START, lane < SOFT_END)   # (1, 128)
    soft_mask_f = soft_mask.astype(jnp.float32)

    # One shared row max over the 30-lane softmax region (softmax is shift
    # invariant per row, so this is exact as long as a group's logits do not
    # sit ~87+ below the row max -- true for this small MLP).
    m = jnp.max(jnp.where(soft_mask, y, -1e30), axis=-1, keepdims=True)  # (TB, 1)

    # Single fused exp pass for both heads:
    #   softmax lanes: exp(y - m)    sigmoid / padded lanes: exp(-y)
    e = jnp.exp(jnp.where(soft_mask, y - m, -y))              # (TB, 128)

    # Softmax numerators only (exact zeros outside the region -- jnp.where, not
    # a multiply, so exp(-y)=inf on a sigmoid lane can never create 0*inf NaNs
    # inside the matmul accumulation below).
    e_soft = jnp.where(soft_mask, e, 0.0)

    # Per-group denominators broadcast back to 128 lanes via one small
    # block-structured 0/1 matmul on the MXU (kept per review: MXU has slack on
    # v6e/v7x for this tiny kernel).
    gsum = jnp.dot(e_soft, g_ref[...], preferred_element_type=jnp.float32)
    gsum = gsum + (1.0 - soft_mask_f)                         # avoid 0 denom outside
    gsum = jnp.maximum(gsum, 1e-30)                           # underflow guard

    soft_out = e_soft / gsum                                  # exact f32 division
    sig_out = 1.0 / (1.0 + e)                                 # sigmoid(y) on its lanes
    o_ref[...] = jnp.where(soft_mask, soft_out, sig_out)      # unmasked 128-lane store


def _round_up(n, m):
    return ((n + m - 1) // m) * m


def _softmax_group_matrix():
    # G[i, j] = 1 iff lanes i and j belong to the same 5-wide softmax group.
    idx = jnp.arange(OUT_PAD)
    in_soft = (idx >= SOFT_START) & (idx < SOFT_END)
    grp = (idx - SOFT_START) // SOFTMAX_WIDTH
    grp_i = jnp.where(in_soft, grp, -1)
    grp_j = jnp.where(in_soft, grp, -2)   # distinct sentinels: never match
    return (grp_i[:, None] == grp_j[None, :]).astype(jnp.float32)


def prepare_params(params):
    """One-time conversion to kernel-ready params (done OUTSIDE the jitted
    forward per perf review): lane-pad the output projection to 128 columns and
    build the softmax group-sum matrix."""
    w1, b1, w2, b2, wo, bo = params
    wo_p = jnp.pad(wo, ((0, 0), (0, OUT_PAD - PO_DIM)))
    bo_p = jnp.pad(bo, ((0, 0), (0, OUT_PAD - PO_DIM)))
    g = _softmax_group_matrix()
    return (w1, b1, w2, b2, wo_p, bo_p, g)


@partial(jax.jit, static_argnames=("return_padded",))
def decoder_forward(x, prepared_params, return_padded=False):
    w1, b1, w2, b2, wo_p, bo_p, g = prepared_params
    B = x.shape[0]

    # Tile selection: large tiles amortize the ~0.35 us per-grid-step overhead;
    # the grid is forced to >= 2 steps when B allows it so the batch axis can
    # shard across both v7x TensorCores (no-op on v5e/v6e).  Working set per
    # step is ~tb*(64+128)*4*2 bytes -> ~6 MiB at tb=4096, plus ~210 KiB of
    # resident weights/G -- inside default scoped VMEM on all generations.
    n_steps = max(2 if B >= 16 else 1, pl.cdiv(B, MAX_TILE))
    tb = _round_up(pl.cdiv(B, n_steps), 8)
    Bp = _round_up(B, tb)
    if Bp != B:
        x = jnp.pad(x, ((0, Bp - B), (0, 0)))

    h1, h2 = HIDDEN_DIMS
    cost = pl.CostEstimate(
        flops=2 * Bp * (STATE_DIM * h1 + h1 * h2 + h2 * OUT_PAD + OUT_PAD * OUT_PAD),
        transcendentals=2 * Bp * OUT_PAD,
        bytes_accessed=4 * (Bp * (STATE_DIM + OUT_PAD)
                            + STATE_DIM * h1 + h1 + h1 * h2 + h2
                            + h2 * OUT_PAD + OUT_PAD + OUT_PAD * OUT_PAD),
    )

    out = pl.pallas_call(
        decoder_kernel,
        out_shape=jax.ShapeDtypeStruct((Bp, OUT_PAD), jnp.float32),
        grid=(Bp // tb,),
        in_specs=[
            pl.BlockSpec((tb, STATE_DIM), lambda i: (i, 0)),            # x tile
            pl.BlockSpec((STATE_DIM, h1), lambda i: (0, 0)),            # w1 (resident)
            pl.BlockSpec((1, h1), lambda i: (0, 0)),                    # b1
            pl.BlockSpec((h1, h2), lambda i: (0, 0)),                   # w2
            pl.BlockSpec((1, h2), lambda i: (0, 0)),                    # b2
            pl.BlockSpec((h2, OUT_PAD), lambda i: (0, 0)),              # wo (padded)
            pl.BlockSpec((1, OUT_PAD), lambda i: (0, 0)),               # bo (padded)
            pl.BlockSpec((OUT_PAD, OUT_PAD), lambda i: (0, 0)),         # group matrix
        ],
        out_specs=pl.BlockSpec((tb, OUT_PAD), lambda i: (i, 0)),
        compiler_params=pltpu.CompilerParams(
            dimension_semantics=("parallel",)),
        cost_estimate=cost,
    )(x, w1, b1, w2, b2, wo_p, bo_p, g)

    if return_padded:
        # Lane-dense (Bp, 128) slab: lets the consumer slice/fuse lazily instead
        # of paying an extra HBM read+write for the narrow 35-column copy.
        return out
    return out[:B, :PO_DIM]


def _xavier_uniform(key, out_dim, in_dim, gain):
    # matches torch.nn.init.xavier_uniform_ on a (out, in) weight
    bound = gain * (6.0 / (in_dim + out_dim)) ** 0.5
    return jax.random.uniform(key, (out_dim, in_dim), jnp.float32, -bound, bound)


def init_params(key):
    relu_gain = 2.0 ** 0.5       # nn.init.calculate_gain('relu')
    linear_gain = 1.0            # nn.init.calculate_gain('linear')
    k1, k2, k3 = jax.random.split(key, 3)
    # stored transposed vs. PyTorch: (in_features, out_features) so y = x @ W + b
    w1 = _xavier_uniform(k1, HIDDEN_DIMS[0], STATE_DIM, relu_gain).T       # (64, 64)
    b1 = jnp.zeros((1, HIDDEN_DIMS[0]), jnp.float32)
    w2 = _xavier_uniform(k2, HIDDEN_DIMS[1], HIDDEN_DIMS[0], relu_gain).T  # (64, 64)
    b2 = jnp.zeros((1, HIDDEN_DIMS[1]), jnp.float32)
    wo = _xavier_uniform(k3, PO_DIM, HIDDEN_DIMS[1], linear_gain).T        # (64, 35)
    bo = jnp.zeros((1, PO_DIM), jnp.float32)
    return (w1, b1, w2, b2, wo, bo)


def decoder_reference(x, params):
    # Pure-JAX reference at HIGHEST precision so the parity check compares
    # f32-accurate numerics on both sides.
    w1, b1, w2, b2, wo, bo = params
    hp = jax.lax.Precision.HIGHEST
    h = jnp.maximum(jnp.dot(x, w1, precision=hp) + b1, 0.0)
    h = jnp.maximum(jnp.dot(h, w2, precision=hp) + b2, 0.0)
    y = jnp.dot(h, wo, precision=hp) + bo
    segs = [jax.nn.sigmoid(y[:, :SIGMOID_HEAD])]
    off = SIGMOID_HEAD
    for _ in range(SOFTMAX_GROUPS):
        segs.append(jax.nn.softmax(y[:, off:off + SOFTMAX_WIDTH], axis=-1))
        off += SOFTMAX_WIDTH
    segs.append(jax.nn.sigmoid(y[:, off:]))
    return jnp.concatenate(segs, axis=-1)


if __name__ == "__main__":
    key = jax.random.PRNGKey(0)
    kp, kx = jax.random.split(key)
    params = init_params(kp)
    prepared = prepare_params(params)

    batch = 8
    x = jax.random.normal(kx, (batch, STATE_DIM), jnp.float32)

    out = decoder_forward(x, prepared)
    out = jax.block_until_ready(out)

    ref = decoder_reference(x, params)
    assert out.shape == (batch, PO_DIM), out.shape
    assert bool(jnp.all(jnp.isfinite(out))), "non-finite output"
    # Outputs are probabilities in [0, 1]; 2e-3 absolute tolerance absorbs any
    # residual MXU f32 pass-structure difference between Mosaic and XLA.
    max_err = float(jnp.max(jnp.abs(out - ref)))
    assert max_err < 2e-3, f"mismatch vs JAX reference: max abs err {max_err}"

    print("KERNEL_OK")
</pallas_src>

<mosaic_0001>
module attributes {stable_mosaic.version = 11 : i64} {
  func.func @decoder_kernel(%arg0: i32, %arg1: memref<8x64xf32, #tpu.memory_space<vmem>>, %arg2: memref<64x64xf32, #tpu.memory_space<vmem>>, %arg3: memref<1x64xf32, #tpu.memory_space<vmem>>, %arg4: memref<64x64xf32, #tpu.memory_space<vmem>>, %arg5: memref<1x64xf32, #tpu.memory_space<vmem>>, %arg6: memref<64x128xf32, #tpu.memory_space<vmem>>, %arg7: memref<1x128xf32, #tpu.memory_space<vmem>>, %arg8: memref<128x128xf32, #tpu.memory_space<vmem>>, %arg9: memref<8x128xf32, #tpu.memory_space<vmem>>) attributes {dimension_semantics = [#tpu.dimension_semantics<parallel>], iteration_bounds = array<i64: 1>, scalar_prefetch = 0 : i64, scratch_operands = 0 : i64, tpu.core_type = #tpu.core_type<tc>, window_params = [{transform_indices = @transform_0, window_bounds = array<i64: 8, 64>}, {pipeline_mode = #tpu.pipeline_mode<synchronous>, transform_indices = @transform_1, window_bounds = array<i64: 64, 64>}, {pipeline_mode = #tpu.pipeline_mode<synchronous>, transform_indices = @transform_2, window_bounds = array<i64: 1, 64>}, {pipeline_mode = #tpu.pipeline_mode<synchronous>, transform_indices = @transform_3, window_bounds = array<i64: 64, 64>}, {pipeline_mode = #tpu.pipeline_mode<synchronous>, transform_indices = @transform_4, window_bounds = array<i64: 1, 64>}, {pipeline_mode = #tpu.pipeline_mode<synchronous>, transform_indices = @transform_5, window_bounds = array<i64: 64, 128>}, {pipeline_mode = #tpu.pipeline_mode<synchronous>, transform_indices = @transform_6, window_bounds = array<i64: 1, 128>}, {pipeline_mode = #tpu.pipeline_mode<synchronous>, transform_indices = @transform_7, window_bounds = array<i64: 128, 128>}, {transform_indices = @transform_8, window_bounds = array<i64: 8, 128>}]} {
    %c0 = arith.constant 0 : index
    %c0_0 = arith.constant 0 : index
    %0 = vector.load %arg1[%c0, %c0_0] : memref<8x64xf32, #tpu.memory_space<vmem>>, vector<8x64xf32>
    %c0_1 = arith.constant 0 : index
    %c0_2 = arith.constant 0 : index
    %1 = vector.load %arg2[%c0_1, %c0_2] : memref<64x64xf32, #tpu.memory_space<vmem>>, vector<64x64xf32>
    %cst = arith.constant dense<0.000000e+00> : vector<8x64xf32>
    %2 = tpu.matmul %0, %1, %cst {dimension_numbers = #tpu.dot_dimension_numbers<[1], [0], [0], [1], [0, 0, 1, 1], [], []>} : vector<8x64xf32>, vector<64x64xf32>, vector<8x64xf32> -> vector<8x64xf32>
    %c0_3 = arith.constant 0 : index
    %c0_4 = arith.constant 0 : index
    %3 = vector.load %arg3[%c0_3, %c0_4] : memref<1x64xf32, #tpu.memory_space<vmem>>, vector<1x64xf32>
    %4 = vector.broadcast %3 : vector<1x64xf32> to vector<8x64xf32>
    %5 = arith.addf %2, %4 : vector<8x64xf32>
    %cst_5 = arith.constant 0.000000e+00 : f32
    %6 = vector.broadcast %cst_5 : f32 to vector<8x64xf32>
    %7 = arith.maximumf %5, %6 : vector<8x64xf32>
    %c0_6 = arith.constant 0 : index
    %c0_7 = arith.constant 0 : index
    %8 = vector.load %arg4[%c0_6, %c0_7] : memref<64x64xf32, #tpu.memory_space<vmem>>, vector<64x64xf32>
    %cst_8 = arith.constant dense<0.000000e+00> : vector<8x64xf32>
    %9 = tpu.matmul %7, %8, %cst_8 {dimension_numbers = #tpu.dot_dimension_numbers<[1], [0], [0], [1], [0, 0, 1, 1], [], []>} : vector<8x64xf32>, vector<64x64xf32>, vector<8x64xf32> -> vector<8x64xf32>
    %c0_9 = arith.constant 0 : index
    %c0_10 = arith.constant 0 : index
    %10 = vector.load %arg5[%c0_9, %c0_10] : memref<1x64xf32, #tpu.memory_space<vmem>>, vector<1x64xf32>
    %11 = vector.broadcast %10 : vector<1x64xf32> to vector<8x64xf32>
    %12 = arith.addf %9, %11 : vector<8x64xf32>
    %cst_11 = arith.constant 0.000000e+00 : f32
    %13 = vector.broadcast %cst_11 : f32 to vector<8x64xf32>
    %14 = arith.maximumf %12, %13 : vector<8x64xf32>
    %c0_12 = arith.constant 0 : index
    %c0_13 = arith.constant 0 : index
    %15 = vector.load %arg6[%c0_12, %c0_13] : memref<64x128xf32, #tpu.memory_space<vmem>>, vector<64x128xf32>
    %cst_14 = arith.constant dense<0.000000e+00> : vector<8x128xf32>
    %16 = tpu.matmul %14, %15, %cst_14 {dimension_numbers = #tpu.dot_dimension_numbers<[1], [0], [0], [1], [0, 0, 1, 1], [], []>} : vector<8x64xf32>, vector<64x128xf32>, vector<8x128xf32> -> vector<8x128xf32>
    %c0_15 = arith.constant 0 : index
    %c0_16 = arith.constant 0 : index
    %17 = vector.load %arg7[%c0_15, %c0_16] : memref<1x128xf32, #tpu.memory_space<vmem>>, vector<1x128xf32>
    %18 = vector.broadcast %17 : vector<1x128xf32> to vector<8x128xf32>
    %19 = arith.addf %16, %18 : vector<8x128xf32>
    %20 = tpu.iota {dimensions = array<i32: 1>} : vector<1x128xi32>
    %c2_i32 = arith.constant 2 : i32
    %21 = vector.broadcast %c2_i32 : i32 to vector<1x128xi32>
    %22 = arith.cmpi sge, %20, %21 : vector<1x128xi32>
    %c32_i32 = arith.constant 32 : i32
    %23 = vector.broadcast %c32_i32 : i32 to vector<1x128xi32>
    %24 = arith.cmpi slt, %20, %23 : vector<1x128xi32>
    %25 = arith.andi %22, %24 : vector<1x128xi1>
    %26 = arith.extui %25 : vector<1x128xi1> to vector<1x128xi32>
    %27 = arith.sitofp %26 : vector<1x128xi32> to vector<1x128xf32>
    %cst_17 = arith.constant -1.000000e+30 : f32
    %28 = vector.shape_cast %25 : vector<1x128xi1> to vector<1x128xi1>
    %29 = vector.broadcast %28 : vector<1x128xi1> to vector<8x128xi1>
    %30 = vector.broadcast %cst_17 : f32 to vector<8x128xf32>
    %31 = arith.select %29, %19, %30 : vector<8x128xi1>, vector<8x128xf32>
    %cst_18 = arith.constant dense<0xFF800000> : vector<8xf32>
    %32 = vector.multi_reduction <maximumf>, %31, %cst_18 [1] : vector<8x128xf32> to vector<8xf32>
    %33 = vector.shape_cast %32 : vector<8xf32> to vector<8x1xf32>
    %34 = vector.broadcast %33 : vector<8x1xf32> to vector<8x128xf32>
    %35 = arith.subf %19, %34 : vector<8x128xf32>
    %cst_19 = arith.constant 0.000000e+00 : f32
    %36 = vector.broadcast %cst_19 : f32 to vector<8x128xf32>
    %37 = arith.subf %36, %19 : vector<8x128xf32>
    %38 = vector.shape_cast %25 : vector<1x128xi1> to vector<1x128xi1>
    %39 = vector.broadcast %38 : vector<1x128xi1> to vector<8x128xi1>
    %40 = arith.select %39, %35, %37 : vector<8x128xi1>, vector<8x128xf32>
    %41 = math.exp %40 : vector<8x128xf32>
    %cst_20 = arith.constant 0.000000e+00 : f32
    %42 = vector.shape_cast %25 : vector<1x128xi1> to vector<1x128xi1>
    %43 = vector.broadcast %42 : vector<1x128xi1> to vector<8x128xi1>
    %44 = vector.broadcast %cst_20 : f32 to vector<8x128xf32>
    %45 = arith.select %43, %41, %44 : vector<8x128xi1>, vector<8x128xf32>
    %c0_21 = arith.constant 0 : index
    %c0_22 = arith.constant 0 : index
    %46 = vector.load %arg8[%c0_21, %c0_22] : memref<128x128xf32, #tpu.memory_space<vmem>>, vector<128x128xf32>
    %cst_23 = arith.constant dense<0.000000e+00> : vector<8x128xf32>
    %47 = tpu.matmul %45, %46, %cst_23 {dimension_numbers = #tpu.dot_dimension_numbers<[1], [0], [0], [1], [0, 0, 1, 1], [], []>} : vector<8x128xf32>, vector<128x128xf32>, vector<8x128xf32> -> vector<8x128xf32>
    %cst_24 = arith.constant 1.000000e+00 : f32
    %48 = vector.broadcast %cst_24 : f32 to vector<1x128xf32>
    %49 = arith.subf %48, %27 : vector<1x128xf32>
    %50 = vector.broadcast %49 : vector<1x128xf32> to vector<8x128xf32>
    %51 = arith.addf %47, %50 : vector<8x128xf32>
    %cst_25 = arith.constant 1.000000e-30 : f32
    %52 = vector.broadcast %cst_25 : f32 to vector<8x128xf32>
    %53 = arith.maximumf %51, %52 : vector<8x128xf32>
    %54 = arith.divf %45, %53 : vector<8x128xf32>
    %cst_26 = arith.constant 1.000000e+00 : f32
    %55 = vector.broadcast %cst_26 : f32 to vector<8x128xf32>
    %56 = arith.addf %55, %41 : vector<8x128xf32>
    %cst_27 = arith.constant 1.000000e+00 : f32
    %57 = vector.broadcast %cst_27 : f32 to vector<8x128xf32>
    %58 = arith.divf %57, %56 : vector<8x128xf32>
    %59 = vector.shape_cast %25 : vector<1x128xi1> to vector<1x128xi1>
    %60 = vector.broadcast %59 : vector<1x128xi1> to vector<8x128xi1>
    %61 = arith.select %60, %54, %58 : vector<8x128xi1>, vector<8x128xf32>
    %c0_28 = arith.constant 0 : index
    %c0_29 = arith.constant 0 : index
    %62 = vector.load %arg9[%c0_28, %c0_29] : memref<8x128xf32, #tpu.memory_space<vmem>>, vector<8x128xf32>
    tpu.vector_store %arg9[%c0_28, %c0_29], %61 {strides = array<i32>} : memref<8x128xf32, #tpu.memory_space<vmem>>, vector<8x128xf32>,
    return
  }
  func.func @transform_0(%arg0: i32) -> (i32, i32) {
    %c0_i32 = arith.constant 0 : i32
    %c0_i32_0 = arith.constant 0 : i32
    return %arg0, %c0_i32 : i32, i32
  }
  func.func @transform_1(%arg0: i32) -> (i32, i32) {
    %c0_i32 = arith.constant 0 : i32
    %c0_i32_0 = arith.constant 0 : i32
    %c0_i32_1 = arith.constant 0 : i32
    return %c0_i32, %c0_i32_0 : i32, i32
  }
  func.func @transform_2(%arg0: i32) -> (i32, i32) {
    %c0_i32 = arith.constant 0 : i32
    %c0_i32_0 = arith.constant 0 : i32
    %c0_i32_1 = arith.constant 0 : i32
    return %c0_i32, %c0_i32_0 : i32, i32
  }
  func.func @transform_3(%arg0: i32) -> (i32, i32) {
    %c0_i32 = arith.constant 0 : i32
    %c0_i32_0 = arith.constant 0 : i32
    %c0_i32_1 = arith.constant 0 : i32
    return %c0_i32, %c0_i32_0 : i32, i32
  }
  func.func @transform_4(%arg0: i32) -> (i32, i32) {
    %c0_i32 = arith.constant 0 : i32
    %c0_i32_0 = arith.constant 0 : i32
    %c0_i32_1 = arith.constant 0 : i32
    return %c0_i32, %c0_i32_0 : i32, i32
  }
  func.func @transform_5(%arg0: i32) -> (i32, i32) {
    %c0_i32 = arith.constant 0 : i32
    %c0_i32_0 = arith.constant 0 : i32
    %c0_i32_1 = arith.constant 0 : i32
    return %c0_i32, %c0_i32_0 : i32, i32
  }
  func.func @transform_6(%arg0: i32) -> (i32, i32) {
    %c0_i32 = arith.constant 0 : i32
    %c0_i32_0 = arith.constant 0 : i32
    %c0_i32_1 = arith.constant 0 : i32
    return %c0_i32, %c0_i32_0 : i32, i32
  }
  func.func @transform_7(%arg0: i32) -> (i32, i32) {
    %c0_i32 = arith.constant 0 : i32
    %c0_i32_0 = arith.constant 0 : i32
    %c0_i32_1 = arith.constant 0 : i32
    return %c0_i32, %c0_i32_0 : i32, i32
  }
  func.func @transform_8(%arg0: i32) -> (i32, i32) {
    %c0_i32 = arith.constant 0 : i32
    %c0_i32_0 = arith.constant 0 : i32
    return %arg0, %c0_i32 : i32, i32
  }
}

</mosaic_0001>

<llo_original>
// kernel: decoder_forward.1
$region0: #{decoder_forward.1}
  #allocation0 [shape = 'u32[]', space=smem, size = 0x4, offset = 0x4, fixed_abs, tag = 'smem constant byte address 0x4 - core index']
  #allocation1 [shape = 'u32[144,128]{1,0:T(1,128)}', space=vmem, size = 0x12000, scoped, tag = 'internal scratch']
  %s0 = inlined_call_operand.hbm [shape: f32[8,64], index: 0, kind: input, shape index: {}]
  %s1 = inlined_call_operand.hbm [shape: f32[64,64], index: 1, kind: input, shape index: {}]
  %s2 = inlined_call_operand.vmem [shape: f32[1,64], index: 2, kind: input, shape index: {}]
  %s3 = inlined_call_operand.hbm [shape: f32[64,64], index: 3, kind: input, shape index: {}]
  %s4 = inlined_call_operand.vmem [shape: f32[1,64], index: 4, kind: input, shape index: {}]
  %s5 = inlined_call_operand.hbm [shape: f32[64,128], index: 5, kind: input, shape index: {}]
  %s6 = inlined_call_operand.vmem [shape: f32[1,128], index: 6, kind: input, shape index: {}]
  %s7 = inlined_call_operand.hbm [shape: f32[128,128], index: 7, kind: input, shape index: {}]
  %s8 = inlined_call_operand.hbm [shape: f32[8,128], index: 8, kind: output, shape index: {}]
  %s9 = sld [smem:[#allocation0]]
  $region62: #{decoder_forward.1} parent=0
    _
  %s11 = ssub.s32 1, %s9
  %s12 = scalar_select 0, %s11, %s9
  $region1: #{decoder_forward.1} parent=0
    #allocation2 [shape = 'u8[4096]{0}', space=vmem, size = 0x1000, scoped, tag = 'input window, operand 0, single buffered']
    #allocation3 [shape = 's32[1]{0}', space=sflag, size = 0x4, scoped, tag = 'scoped memory for decoder_forward.1']
    #allocation4 [shape = 's32[1]{0}', space=sflag, size = 0x4, scoped, tag = 'scoped memory for decoder_forward.1']
    #allocation5 [shape = 'u8[32768]{0}', space=vmem, size = 0x8000, scoped, tag = 'input window, operand 1, single buffered']
    #allocation6 [shape = 's32[1]{0}', space=sflag, size = 0x4, scoped, tag = 'scoped memory for decoder_forward.1']
    #allocation7 [shape = 'u8[32768]{0}', space=vmem, size = 0x8000, scoped, tag = 'input window, operand 3, single buffered']
    #allocation8 [shape = 'u8[32768]{0}', space=vmem, size = 0x8000, scoped, tag = 'input window, operand 5, single buffered']
    #allocation9 [shape = 's32[1]{0}', space=sflag, size = 0x4, scoped, tag = 'scoped memory for decoder_forward.1']
    #allocation10 [shape = 'u8[65536]{0}', space=vmem, size = 0x10000, scoped, tag = 'input window, operand 7, single buffered']
    #allocation11 [shape = 'u8[4096]{0}', space=vmem, size = 0x1000, scoped, tag = 'output window, operand 0, single buffered']
    %13 = vsyncpa [#allocation3], 0
    %14 = vsyncpa [#allocation6], 0
    %15 = vsyncpa [#allocation9], 0
    %16 = vsyncpa [#allocation4], 0
    // Predicated region
    $region2: #{decoder_forward.1} parent=1 // pred_check
      _
    $region3: #{decoder_forward.1} parent=1 // pred_check_branch
      %18 = sbr.rel (0) target = $region5
    $region4: #{decoder_forward.1} parent=1 // pred_region
      %s20 = ssub.s32 128, 128
      %21 = vsyncadd [#allocation3], %s20
      %s23 = sshll.u32 [#allocation2], 4
      %s24 = int_to_ptr.vmem [resolvable:$true] %s23
      %26 = dma.hbm_to_vmem [thread:$0]  %s0, 128, %s24, [#allocation3]
    $region5: #{decoder_forward.1} parent=1 // pred_fallthru
      _
    // Predicated region
    $region6: #{decoder_forward.1} parent=1 // pred_check
      _
    $region7: #{decoder_forward.1} parent=1 // pred_check_branch
      %28 = sbr.rel (0) target = $region9
    $region8: #{decoder_forward.1} parent=1 // pred_region
      %s30 = ssub.s32 1024, 1024
      %31 = vsyncadd [#allocation6], %s30
      %s32 = sshll.u32 [#allocation5], 4
      %s33 = int_to_ptr.vmem [resolvable:$true] %s32
      %38 = dma.hbm_to_vmem [thread:$0]  %s1, 1024, %s33, [#allocation6], 128, 128, 8
    $region9: #{decoder_forward.1} parent=1 // pred_fallthru
      _
    // Predicated region
    $region10: #{decoder_forward.1} parent=1 // pred_check
      _
    $region11: #{decoder_forward.1} parent=1 // pred_check_branch
      %40 = sbr.rel (0) target = $region13
    $region12: #{decoder_forward.1} parent=1 // pred_region
      _
    $region13: #{decoder_forward.1} parent=1 // pred_fallthru
      _
    // Predicated region
    $region14: #{decoder_forward.1} parent=1 // pred_check
      _
    $region15: #{decoder_forward.1} parent=1 // pred_check_branch
      %42 = sbr.rel (0) target = $region17
    $region16: #{decoder_forward.1} parent=1 // pred_region
      %s44 = ssub.s32 1024, 1024
      %45 = vsyncadd [#allocation6], %s44
      %s46 = sshll.u32 [#allocation7], 4
      %s47 = int_to_ptr.vmem [resolvable:$true] %s46
      %52 = dma.hbm_to_vmem [thread:$0]  %s3, 1024, %s47, [#allocation6], 128, 128, 8
    $region17: #{decoder_forward.1} parent=1 // pred_fallthru
      _
    // Predicated region
    $region18: #{decoder_forward.1} parent=1 // pred_check
      _
    $region19: #{decoder_forward.1} parent=1 // pred_check_branch
      %54 = sbr.rel (0) target = $region21
    $region20: #{decoder_forward.1} parent=1 // pred_region
      _
    $region21: #{decoder_forward.1} parent=1 // pred_fallthru
      _
    // Predicated region
    $region22: #{decoder_forward.1} parent=1 // pred_check
      _
    $region23: #{decoder_forward.1} parent=1 // pred_check_branch
      %56 = sbr.rel (0) target = $region25
    $region24: #{decoder_forward.1} parent=1 // pred_region
      %s58 = ssub.s32 1024, 1024
      %59 = vsyncadd [#allocation9], %s58
      %s60 = sshll.u32 [#allocation8], 4
      %s61 = int_to_ptr.vmem [resolvable:$true] %s60
      %66 = dma.hbm_to_vmem [thread:$0]  %s5, 1024, %s61, [#allocation9], 128, 128, 8
    $region25: #{decoder_forward.1} parent=1 // pred_fallthru
      _
    // Predicated region
    $region26: #{decoder_forward.1} parent=1 // pred_check
      _
    $region27: #{decoder_forward.1} parent=1 // pred_check_branch
      %68 = sbr.rel (0) target = $region29
    $region28: #{decoder_forward.1} parent=1 // pred_region
      _
    $region29: #{decoder_forward.1} parent=1 // pred_fallthru
      _
    // Predicated region
    $region30: #{decoder_forward.1} parent=1 // pred_check
      _
    $region31: #{decoder_forward.1} parent=1 // pred_check_branch
      %70 = sbr.rel (0) target = $region33
    $region32: #{decoder_forward.1} parent=1 // pred_region
      %s72 = ssub.s32 2048, 2048
      %73 = vsyncadd [#allocation9], %s72
      %s74 = sshll.u32 [#allocation10], 4
      %s75 = int_to_ptr.vmem [resolvable:$true] %s74
      %80 = dma.hbm_to_vmem [thread:$0]  %s7, 2048, %s75, [#allocation9], 128, 128, 8
    $region33: #{decoder_forward.1} parent=1 // pred_fallthru
      _
    // Predicated region
    $region34: #{decoder_forward.1} parent=1 // pred_check
      _
    $region35: #{decoder_forward.1} parent=1 // pred_check_branch
      %82 = sbr.rel (0) target = $region37
    $region36: #{decoder_forward.1} parent=1 // pred_region
      %83 = dma.done [#allocation3], 128
    $region37: #{decoder_forward.1} parent=1 // pred_fallthru
      _
    // Predicated region
    $region38: #{decoder_forward.1} parent=1 // pred_check
      _
    $region39: #{decoder_forward.1} parent=1 // pred_check_branch
      %85 = sbr.rel (0) target = $region41
    $region40: #{decoder_forward.1} parent=1 // pred_region
      %86 = dma.done [#allocation6], 1024
    $region41: #{decoder_forward.1} parent=1 // pred_fallthru
      _
    // Predicated region
    $region42: #{decoder_forward.1} parent=1 // pred_check
      _
    $region43: #{decoder_forward.1} parent=1 // pred_check_branch
      %88 = sbr.rel (0) target = $region45
    $region44: #{decoder_forward.1} parent=1 // pred_region
      %89 = dma.done [#allocation6], 1024
    $region45: #{decoder_forward.1} parent=1 // pred_fallthru
      _
    // Predicated region
    $region46: #{decoder_forward.1} parent=1 // pred_check
      _
    $region47: #{decoder_forward.1} parent=1 // pred_check_branch
      %91 = sbr.rel (0) target = $region49
    $region48: #{decoder_forward.1} parent=1 // pred_region
      %92 = dma.done [#allocation9], 1024
    $region49: #{decoder_forward.1} parent=1 // pred_fallthru
      _
    // Predicated region
    $region50: #{decoder_forward.1} parent=1 // pred_check
      _
    $region51: #{decoder_forward.1} parent=1 // pred_check_branch
      %94 = sbr.rel (0) target = $region53
    $region52: #{decoder_forward.1} parent=1 // pred_region
      %95 = dma.done [#allocation9], 2048
    $region53: #{decoder_forward.1} parent=1 // pred_fallthru
      _
    %v96 = vld [vmem:[#allocation2] sm:$0xff]
    %v97 = vld [vmem:[#allocation5] sm:$0xff]
    %v98 = vld [vmem:[#allocation5 + $0x8] sm:$0xff]
    %v99 = vld [vmem:[#allocation5 + $0x10] sm:$0xff]
    %v100 = vld [vmem:[#allocation5 + $0x18] sm:$0xff]
    %v101 = vld [vmem:[#allocation5 + $0x20] sm:$0xff]
    %v102 = vld [vmem:[#allocation5 + $0x28] sm:$0xff]
    %v103 = vld [vmem:[#allocation5 + $0x30] sm:$0xff]
    %v104 = vld [vmem:[#allocation5 + $0x38] sm:$0xff]
    %v105 = vld [vmem:[%s2] sm:$0x1]
    %v107 = vlaneseq
    %v108 = vshrl.u32 %v107, 7
    %v109 = vsub.s32 0, %v108
    %v110 = vrot.slane %v105, %v109
    %vm112 = vcmask 523264
    %v114 = vsel %vm112, %v96, 0
    %116 = vmatprep.subr.mxu0 0.0
    %117 = vmatpush1.msra.mxu0 %v97
    %118 = vmatprep.subr.mxu0 0.0
    %119 = vmatpush1.msra.mxu0 %v98
    %120 = vmatprep.subr.mxu0 0.0
    %121 = vmatpush1.msra.mxu0 %v99
    %122 = vmatprep.subr.mxu0 0.0
    %123 = vmatpush1.msra.mxu0 %v100
    %124 = vmatprep.subr.mxu0 0.0
    %125 = vmatpush1.msra.mxu0 %v101
    %126 = vmatprep.subr.mxu0 0.0
    %127 = vmatpush1.msra.mxu0 %v102
    %128 = vmatprep.subr.mxu0 0.0
    %129 = vmatpush1.msra.mxu0 %v103
    %130 = vmatprep.subr.mxu0 0.0
    %131 = vmatpush1.msra.mxu0 %v104
    %132 = vmatprep.subr.mxu0 0.0
    %133 = vmatpush1.msra.mxu0 0.0
    %134 = vmatprep.subr.mxu0 0.0
    %135 = vmatpush1.msra.mxu0 0.0
    %136 = vmatprep.subr.mxu0 0.0
    %137 = vmatpush1.msra.mxu0 0.0
    %138 = vmatprep.subr.mxu0 0.0
    %139 = vmatpush1.msra.mxu0 0.0
    %140 = vmatprep.subr.mxu0 0.0
    %141 = vmatpush1.msra.mxu0 0.0
    %142 = vmatprep.subr.mxu0 0.0
    %143 = vmatpush1.msra.mxu0 0.0
    %144 = vmatprep.subr.mxu0 0.0
    %145 = vmatpush1.msra.mxu0 0.0
    %146 = vmatprep.subr.mxu0 0.0
    %147 = vmatpush1.msra.mxu0 0.0
    %148 = vmatprep.subr.mxu0 0.0
    %149 = vmatpush1.msra.mxu0 0.0
    %150 = vmatprep.subr.mxu0 0.0
    %151 = vmatpush1.msra.mxu0 0.0
    %152 = vmatprep.subr.mxu0 0.0
    %153 = vmatpush1.msra.mxu0 0.0
    %154 = vmatprep.subr.mxu0 0.0
    %155 = vmatpush1.msra.mxu0 0.0
    %156 = vmatprep.subr.mxu0 0.0
    %157 = vmatpush1.msra.mxu0 0.0
    %158 = vmatprep.subr.mxu0 0.0
    %159 = vmatpush1.msra.mxu0 0.0
    %160 = vmatprep.subr.mxu0 0.0
    %161 = vmatpush1.msra.mxu0 0.0
    %162 = vmatprep.subr.mxu0 0.0
    %163 = vmatpush1.msra.mxu0 0.0
    %164 = vmatprep.subr.mxu0 0.0
    %165 = vmatpush1.msra.mxu0 0.0
    %166 = vmatprep.subr.mxu0 0.0
    %167 = vmatpush1.msra.mxu0 0.0
    %168 = vmatprep.subr.mxu0 0.0
    %169 = vmatpush1.msra.mxu0 0.0
    %170 = vmatprep.subr.mxu0 0.0
    %171 = vmatpush1.msra.mxu0 0.0
    %172 = vmatprep.subr.mxu0 0.0
    %173 = vmatpush1.msra.mxu0 0.0
    %174 = vmatprep.subr.mxu0 0.0
    %175 = vmatpush1.msra.mxu0 0.0
    %176 = vmatprep.subr.mxu0 0.0
    %177 = vmatpush1.msra.mxu0 0.0
    %178 = vmatprep.subr.mxu0 0.0
    %179 = vmatpush1.msra.mxu0 0.0
    %180 = vmatprep.mubr.f32.mxu0 0.0
    %181 = vmatmul.mubr.f32.gmra.mrb[0].mxu0 %v114
    %v182 = vpop.f32.mrb[0].mxu0
    %v183 = vadd.f32 %v110, %v182
    %v184 = vpop.f32.mrb[0].mxu0
    %185 = vdwg.mxu0
    %v186 = vmax.f32 %v183, 0.0
    %v187 = vld [vmem:[#allocation7] sm:$0xff]
    %v188 = vld [vmem:[#allocation7 + $0x8] sm:$0xff]
    %v189 = vld [vmem:[#allocation7 + $0x10] sm:$0xff]
    %v190 = vld [vmem:[#allocation7 + $0x18] sm:$0xff]
    %v191 = vld [vmem:[#allocation7 + $0x20] sm:$0xff]
    %v192 = vld [vmem:[#allocation7 + $0x28] sm:$0xff]
    %v193 = vld [vmem:[#allocation7 + $0x30] sm:$0xff]
    %v194 = vld [vmem:[#allocation7 + $0x38] sm:$0xff]
    %v195 = vld [vmem:[%s4] sm:$0x1]
    %v197 = vlaneseq
    %v198 = vshrl.u32 %v197, 7
    %v199 = vsub.s32 0, %v198
    %v200 = vrot.slane %v195, %v199
    %v203 = vsel %vm112, %v186, 0
    %205 = vmatprep.subr.mxu0 0.0
    %206 = vmatpush1.msra.mxu0 %v187
    %207 = vmatprep.subr.mxu0 0.0
    %208 = vmatpush1.msra.mxu0 %v188
    %209 = vmatprep.subr.mxu0 0.0
    %210 = vmatpush1.msra.mxu0 %v189
    %211 = vmatprep.subr.mxu0 0.0
    %212 = vmatpush1.msra.mxu0 %v190
    %213 = vmatprep.subr.mxu0 0.0
    %214 = vmatpush1.msra.mxu0 %v191
    %215 = vmatprep.subr.mxu0 0.0
    %216 = vmatpush1.msra.mxu0 %v192
    %217 = vmatprep.subr.mxu0 0.0
    %218 = vmatpush1.msra.mxu0 %v193
    %219 = vmatprep.subr.mxu0 0.0
    %220 = vmatpush1.msra.mxu0 %v194
    %221 = vmatprep.subr.mxu0 0.0
    %222 = vmatpush1.msra.mxu0 0.0
    %223 = vmatprep.subr.mxu0 0.0
    %224 = vmatpush1.msra.mxu0 0.0
    %225 = vmatprep.subr.mxu0 0.0
    %226 = vmatpush1.msra.mxu0 0.0
    %227 = vmatprep.subr.mxu0 0.0
    %228 = vmatpush1.msra.mxu0 0.0
    %229 = vmatprep.subr.mxu0 0.0
    %230 = vmatpush1.msra.mxu0 0.0
    %231 = vmatprep.subr.mxu0 0.0
    %232 = vmatpush1.msra.mxu0 0.0
    %233 = vmatprep.subr.mxu0 0.0
    %234 = vmatpush1.msra.mxu0 0.0
    %235 = vmatprep.subr.mxu0 0.0
    %236 = vmatpush1.msra.mxu0 0.0
    %237 = vmatprep.subr.mxu0 0.0
    %238 = vmatpush1.msra.mxu0 0.0
    %239 = vmatprep.subr.mxu0 0.0
    %240 = vmatpush1.msra.mxu0 0.0
    %241 = vmatprep.subr.mxu0 0.0
    %242 = vmatpush1.msra.mxu0 0.0
    %243 = vmatprep.subr.mxu0 0.0
    %244 = vmatpush1.msra.mxu0 0.0
    %245 = vmatprep.subr.mxu0 0.0
    %246 = vmatpush1.msra.mxu0 0.0
    %247 = vmatprep.subr.mxu0 0.0
    %248 = vmatpush1.msra.mxu0 0.0
    %249 = vmatprep.subr.mxu0 0.0
    %250 = vmatpush1.msra.mxu0 0.0
    %251 = vmatprep.subr.mxu0 0.0
    %252 = vmatpush1.msra.mxu0 0.0
    %253 = vmatprep.subr.mxu0 0.0
    %254 = vmatpush1.msra.mxu0 0.0
    %255 = vmatprep.subr.mxu0 0.0
    %256 = vmatpush1.msra.mxu0 0.0
    %257 = vmatprep.subr.mxu0 0.0
    %258 = vmatpush1.msra.mxu0 0.0
    %259 = vmatprep.subr.mxu0 0.0
    %260 = vmatpush1.msra.mxu0 0.0
    %261 = vmatprep.subr.mxu0 0.0
    %262 = vmatpush1.msra.mxu0 0.0
    %263 = vmatprep.subr.mxu0 0.0
    %264 = vmatpush1.msra.mxu0 0.0
    %265 = vmatprep.subr.mxu0 0.0
    %266 = vmatpush1.msra.mxu0 0.0
    %267 = vmatprep.subr.mxu0 0.0
    %268 = vmatpush1.msra.mxu0 0.0
    %269 = vmatprep.mubr.f32.mxu0 0.0
    %270 = vmatmul.mubr.f32.gmra.mrb[0].mxu0 %v203
    %v271 = vpop.f32.mrb[0].mxu0
    %v272 = vadd.f32 %v200, %v271
    %v273 = vpop.f32.mrb[0].mxu0
    %274 = vdwg.mxu0
    %v275 = vmax.f32 %v272, 0.0
    %v276 = vld [vmem:[#allocation8] sm:$0xff]
    %v277 = vld [vmem:[#allocation8 + $0x8] sm:$0xff]
    %v278 = vld [vmem:[#allocation8 + $0x10] sm:$0xff]
    %v279 = vld [vmem:[#allocation8 + $0x18] sm:$0xff]
    %v280 = vld [vmem:[#allocation8 + $0x20] sm:$0xff]
    %v281 = vld [vmem:[#allocation8 + $0x28] sm:$0xff]
    %v282 = vld [vmem:[#allocation8 + $0x30] sm:$0xff]
    %v283 = vld [vmem:[#allocation8 + $0x38] sm:$0xff]
    %v284 = vld [vmem:[%s6] sm:$0x1]
    %v286 = vlaneseq
    %v287 = vshrl.u32 %v286, 7
    %v288 = vsub.s32 0, %v287
    %v289 = vrot.slane %v284, %v288
    %v292 = vsel %vm112, %v275, 0
    %294 = vmatprep.subr.mxu0 0.0
    %295 = vmatpush1.msra.mxu0 %v276
    %296 = vmatprep.subr.mxu0 0.0
    %297 = vmatpush1.msra.mxu0 %v277
    %298 = vmatprep.subr.mxu0 0.0
    %299 = vmatpush1.msra.mxu0 %v278
    %300 = vmatprep.subr.mxu0 0.0
    %301 = vmatpush1.msra.mxu0 %v279
    %302 = vmatprep.subr.mxu0 0.0
    %303 = vmatpush1.msra.mxu0 %v280
    %304 = vmatprep.subr.mxu0 0.0
    %305 = vmatpush1.msra.mxu0 %v281
    %306 = vmatprep.subr.mxu0 0.0
    %307 = vmatpush1.msra.mxu0 %v282
    %308 = vmatprep.subr.mxu0 0.0
    %309 = vmatpush1.msra.mxu0 %v283
    %310 = vmatprep.subr.mxu0 0.0
    %311 = vmatpush1.msra.mxu0 0.0
    %312 = vmatprep.subr.mxu0 0.0
    %313 = vmatpush1.msra.mxu0 0.0
    %314 = vmatprep.subr.mxu0 0.0
    %315 = vmatpush1.msra.mxu0 0.0
    %316 = vmatprep.subr.mxu0 0.0
    %317 = vmatpush1.msra.mxu0 0.0
    %318 = vmatprep.subr.mxu0 0.0
    %319 = vmatpush1.msra.mxu0 0.0
    %320 = vmatprep.subr.mxu0 0.0
    %321 = vmatpush1.msra.mxu0 0.0
    %322 = vmatprep.subr.mxu0 0.0
    %323 = vmatpush1.msra.mxu0 0.0
    %324 = vmatprep.subr.mxu0 0.0
    %325 = vmatpush1.msra.mxu0 0.0
    %326 = vmatprep.subr.mxu0 0.0
    %327 = vmatpush1.msra.mxu0 0.0
    %328 = vmatprep.subr.mxu0 0.0
    %329 = vmatpush1.msra.mxu0 0.0
    %330 = vmatprep.subr.mxu0 0.0
    %331 = vmatpush1.msra.mxu0 0.0
    %332 = vmatprep.subr.mxu0 0.0
    %333 = vmatpush1.msra.mxu0 0.0
    %334 = vmatprep.subr.mxu0 0.0
    %335 = vmatpush1.msra.mxu0 0.0
    %336 = vmatprep.subr.mxu0 0.0
    %337 = vmatpush1.msra.mxu0 0.0
    %338 = vmatprep.subr.mxu0 0.0
    %339 = vmatpush1.msra.mxu0 0.0
    %340 = vmatprep.subr.mxu0 0.0
    %341 = vmatpush1.msra.mxu0 0.0
    %342 = vmatprep.subr.mxu0 0.0
    %343 = vmatpush1.msra.mxu0 0.0
    %344 = vmatprep.subr.mxu0 0.0
    %345 = vmatpush1.msra.mxu0 0.0
    %346 = vmatprep.subr.mxu0 0.0
    %347 = vmatpush1.msra.mxu0 0.0
    %348 = vmatprep.subr.mxu0 0.0
    %349 = vmatpush1.msra.mxu0 0.0
    %350 = vmatprep.subr.mxu0 0.0
    %351 = vmatpush1.msra.mxu0 0.0
    %352 = vmatprep.subr.mxu0 0.0
    %353 = vmatpush1.msra.mxu0 0.0
    %354 = vmatprep.subr.mxu0 0.0
    %355 = vmatpush1.msra.mxu0 0.0
    %356 = vmatprep.subr.mxu0 0.0
    %357 = vmatpush1.msra.mxu0 0.0
    %358 = vmatprep.mubr.f32.mxu0 0.0
    %359 = vmatmul.mubr.f32.gmra.mrb[0].mxu0 %v292
    %v360 = vpop.f32.mrb[0].mxu0
    %v361 = vadd.f32 %v289, %v360
    %v362 = vpop.f32.mrb[0].mxu0
    %363 = vdwg.mxu0
    %v364 = vlaneseq
    %v365 = vand.u32 %v364, 127
    %vm366 = vcmp.ge.s32.totalorder %v365, 2
    %vm367 = vcmp.lt.s32.totalorder %v365, 32
    %vm368 = vmand %vm366, %vm367
    %v369 = vsel %vm368, 1, 0
    %v370 = vcvt.s32.f32 %v369
    %vm371 = vcmp.eq.s32.totalorder %v369, 1
    %v372 = vsel %vm371, %v361, -1e+30
    %373 = vmax.xlane.f32.xlu0 %v372
    %v374 = vpop.xlane.xlu0 %373
    %v375 = vsub.f32 %v361, %v374
    %v376 = vsub.f32 0.0, %v361
    %v377 = vsel %vm371, %v375, %v376
    %v378 = vmul.f32 %v377, 1.442695
    %v379 = vpow.pop %v378
    %v380 = vsel %vm371, %v379, 0.0
    %v381 = vld [vmem:[#allocation10] sm:$0xff]
    %v382 = vld [vmem:[#allocation10 + $0x8] sm:$0xff]
    %v383 = vld [vmem:[#allocation10 + $0x10] sm:$0xff]
    %v384 = vld [vmem:[#allocation10 + $0x18] sm:$0xff]
    %v385 = vld [vmem:[#allocation10 + $0x20] sm:$0xff]
    %v386 = vld [vmem:[#allocation10 + $0x28] sm:$0xff]
    %v387 = vld [vmem:[#allocation10 + $0x30] sm:$0xff]
    %v388 = vld [vmem:[#allocation10 + $0x38] sm:$0xff]
    %v389 = vld [vmem:[#allocation10 + $0x40] sm:$0xff]
    %v390 = vld [vmem:[#allocation10 + $0x48] sm:$0xff]
    %v391 = vld [vmem:[#allocation10 + $0x50] sm:$0xff]
    %v392 = vld [vmem:[#allocation10 + $0x58] sm:$0xff]
    %v393 = vld [vmem:[#allocation10 + $0x60] sm:$0xff]
    %v394 = vld [vmem:[#allocation10 + $0x68] sm:$0xff]
    %v395 = vld [vmem:[#allocation10 + $0x70] sm:$0xff]
    %v396 = vld [vmem:[#allocation10 + $0x78] sm:$0xff]
    %v397 = vsub.f32 1.0, %v370
    %398 = vmatprep.subr.mxu0 0.0
    %399 = vmatpush1.msra.mxu0 %v381
    %400 = vmatprep.subr.mxu0 0.0
    %401 = vmatpush1.msra.mxu0 %v382
    %402 = vmatprep.subr.mxu0 0.0
    %403 = vmatpush1.msra.mxu0 %v383
    %404 = vmatprep.subr.mxu0 0.0
    %405 = vmatpush1.msra.mxu0 %v384
    %406 = vmatprep.subr.mxu0 0.0
    %407 = vmatpush1.msra.mxu0 %v385
    %408 = vmatprep.subr.mxu0 0.0
    %409 = vmatpush1.msra.mxu0 %v386
    %410 = vmatprep.subr.mxu0 0.0
    %411 = vmatpush1.msra.mxu0 %v387
    %412 = vmatprep.subr.mxu0 0.0
    %413 = vmatpush1.msra.mxu0 %v388
    %414 = vmatprep.subr.mxu0 0.0
    %415 = vmatpush1.msra.mxu0 %v389
    %416 = vmatprep.subr.mxu0 0.0
    %417 = vmatpush1.msra.mxu0 %v390
    %418 = vmatprep.subr.mxu0 0.0
    %419 = vmatpush1.msra.mxu0 %v391
    %420 = vmatprep.subr.mxu0 0.0
    %421 = vmatpush1.msra.mxu0 %v392
    %422 = vmatprep.subr.mxu0 0.0
    %423 = vmatpush1.msra.mxu0 %v393
    %424 = vmatprep.subr.mxu0 0.0
    %425 = vmatpush1.msra.mxu0 %v394
    %426 = vmatprep.subr.mxu0 0.0
    %427 = vmatpush1.msra.mxu0 %v395
    %428 = vmatprep.subr.mxu0 0.0
    %429 = vmatpush1.msra.mxu0 %v396
    %430 = vmatprep.subr.mxu0 0.0
    %431 = vmatpush1.msra.mxu0 0.0
    %432 = vmatprep.subr.mxu0 0.0
    %433 = vmatpush1.msra.mxu0 0.0
    %434 = vmatprep.subr.mxu0 0.0
    %435 = vmatpush1.msra.mxu0 0.0
    %436 = vmatprep.subr.mxu0 0.0
    %437 = vmatpush1.msra.mxu0 0.0
    %438 = vmatprep.subr.mxu0 0.0
    %439 = vmatpush1.msra.mxu0 0.0
    %440 = vmatprep.subr.mxu0 0.0
    %441 = vmatpush1.msra.mxu0 0.0
    %442 = vmatprep.subr.mxu0 0.0
    %443 = vmatpush1.msra.mxu0 0.0
    %444 = vmatprep.subr.mxu0 0.0
    %445 = vmatpush1.msra.mxu0 0.0
    %446 = vmatprep.subr.mxu0 0.0
    %447 = vmatpush1.msra.mxu0 0.0
    %448 = vmatprep.subr.mxu0 0.0
    %449 = vmatpush1.msra.mxu0 0.0
    %450 = vmatprep.subr.mxu0 0.0
    %451 = vmatpush1.msra.mxu0 0.0
    %452 = vmatprep.subr.mxu0 0.0
    %453 = vmatpush1.msra.mxu0 0.0
    %454 = vmatprep.subr.mxu0 0.0
    %455 = vmatpush1.msra.mxu0 0.0
    %456 = vmatprep.subr.mxu0 0.0
    %457 = vmatpush1.msra.mxu0 0.0
    %458 = vmatprep.subr.mxu0 0.0
    %459 = vmatpush1.msra.mxu0 0.0
    %460 = vmatprep.subr.mxu0 0.0
    %461 = vmatpush1.msra.mxu0 0.0
    %462 = vmatprep.mubr.f32.mxu0 0.0
    %463 = vmatmul.mubr.f32.gmra.mrb[0].mxu0 %v380
    %v464 = vpop.f32.mrb[0].mxu0
    %v465 = vadd.f32 %v397, %v464
    %v466 = vpop.f32.mrb[0].mxu0
    %467 = vdwg.mxu0
    %v468 = vmax.f32 %v465, 1e-30
    %v469 = vrcp.pop %v468
    %v470 = vmul.f32 %v380, %v469
    %v471 = vadd.f32 %v379, 1.0
    %v472 = vrcp.pop %v471
    %v473 = vmul.f32 1.0, %v472
    %v474 = vsel %vm371, %v470, %v473
    %475 = vst [vmem:[#allocation11] sm:$0xff] %v474
    // Predicated region
    $region54: #{decoder_forward.1} parent=1 // pred_check
      _
    $region55: #{decoder_forward.1} parent=1 // pred_check_branch
      %477 = sbr.rel (0) target = $region57
    $region56: #{decoder_forward.1} parent=1 // pred_region
      %s479 = ssub.s32 128, 128
      %480 = vsyncadd [#allocation4], %s479
      %s482 = sshll.u32 [#allocation11], 4
      %s483 = int_to_ptr.vmem [resolvable:$true] %s482
      %485 = dma.vmem_to_hbm [thread:$0]  %s483, 128, %s8, [#allocation4]
    $region57: #{decoder_forward.1} parent=1 // pred_fallthru
      _
    // Predicated region
    $region58: #{decoder_forward.1} parent=1 // pred_check
      _
    $region59: #{decoder_forward.1} parent=1 // pred_check_branch
      %487 = sbr.rel (0) target = $region61
    $region60: #{decoder_forward.1} parent=1 // pred_region
      %488 = dma.done [#allocation4], 128
    $region61: #{decoder_forward.1} parent=1 // pred_fallthru
      _
    %489 = vsyncpa [#allocation3], 1
    %490 = vsyncpa [#allocation6], 1
    %491 = vsyncpa [#allocation9], 1
    %492 = vsyncpa [#allocation4], 1

</llo_original>
